<compile_context>
chip_gen: v6e
topology: v6e:2x2x1
jax: 0.10.0
libtpu: 0.0.40
codegen_flags: <defaults>
</compile_context>

<pallas_src>
import functools

import jax
import jax.numpy as jnp
from jax.experimental import pallas as pl
from jax.experimental.pallas import tpu as pltpu

ALPHA = 0.5

# Sobel kernels in cross-correlation form (match nn.Conv2d weights).
_SOBEL_KX = ((1.0, 0.0, -1.0),
             (2.0, 0.0, -2.0),
             (1.0, 0.0, -1.0))
_SOBEL_KY = ((1.0, 2.0, 1.0),
             (0.0, 0.0, 0.0),
             (-1.0, -2.0, -1.0))


def _grad_log_loss_kernel(pred_ref, targ_ref, out_ref, *, img_h, alpha):
  # pred_ref / targ_ref: (TB*H, W) block = TB images stacked along rows.
  # out_ref: (1, 1, W) lane vector of per-column partial sums for this block.
  d = pred_ref[...].astype(jnp.float32) - targ_ref[...].astype(jnp.float32)
  rows, width = d.shape

  # Hoisted border masks (built once per block, reused by all shifted terms).
  col = jax.lax.broadcasted_iota(jnp.int32, d.shape, 1)
  row = jax.lax.broadcasted_iota(jnp.int32, d.shape, 0)
  if rows != img_h:            # several images folded along the row axis
    row = row % img_h          # per-image row index (static python branch)
  mask_l = col >= 1            # has a left neighbor inside the image
  mask_r = col < width - 1     # has a right neighbor
  mask_u = row >= 1            # has a row above (same image)
  mask_d = row < img_h - 1     # has a row below (same image)

  def shift(x, k, axis, mask):
    # result[i] = x[i - k] along `axis`, zero-filled outside the image
    # (reproduces Conv2d zero padding; rolls wrap but the mask zeroes them).
    rolled = pltpu.roll(x, shift=k % x.shape[axis], axis=axis)
    return jnp.where(mask, rolled, 0.0)

  # Horizontal pass (lane axis): [1, 0, -1] and [1, 2, 1].
  left = shift(d, 1, 1, mask_l)      # d[r, c-1]
  right = shift(d, -1, 1, mask_r)    # d[r, c+1]
  h_diff = left - right
  h_smooth = left + 2.0 * d + right

  # Vertical pass (sublane axis): [1, 2, 1] and [1, 0, -1].
  dx = shift(h_diff, 1, 0, mask_u) + 2.0 * h_diff + shift(h_diff, -1, 0, mask_d)
  dy = shift(h_smooth, 1, 0, mask_u) - shift(h_smooth, -1, 0, mask_d)

  # log(|dx|+a) + log(|dy|+a) == log((|dx|+a) * (|dy|+a)); both factors are
  # >= alpha > 0, so the fusion is exact: one EUP log pass per element.
  vals = jnp.log((jnp.abs(dx) + alpha) * (jnp.abs(dy) + alpha))

  # Partial reduce over rows/sublanes only; keep the lane axis for the output
  # (final cross-lane + cross-block reduce happens in the wrapper).
  out_ref[...] = jnp.sum(vals, axis=0).reshape(1, 1, width)


def _pick_images_per_block(B, H, W, itemsize):
  """Largest divisor of B whose block fits VMEM, keeps >=~4 grid steps, and
  keeps the sublane block dim a multiple of 8 (or equal to the full dim)."""
  # Working set per image in a block: 2 inputs x 2 pipeline buffers at the
  # input dtype plus ~10 live f32 intermediates (d, left/right, h_*, dx, dy,
  # masks, vals).
  per_image = H * W * (4 * itemsize + 10 * 4)
  vmem_budget = 24 << 20            # conservative: fits v5e/v7x scoped VMEM
  cap_mem = max(1, vmem_budget // max(per_image, 1))
  cap_steps = max(1, B // 4)        # keep >= min(B, 4) grid steps
  cap = max(1, min(cap_mem, cap_steps))

  best = None
  for div in range(1, B + 1):
    if B % div != 0 or div > cap:
      continue
    if div == B or (div * H) % 8 == 0:   # (8, 128) block constraint
      best = div
  if best is None:
    # Fallback: smallest legal divisor (possibly the whole batch).
    for div in range(1, B + 1):
      if B % div == 0 and ((div * H) % 8 == 0 or div == B):
        best = div
        break
  return best


def grad_log_loss(pred, target, alpha=ALPHA):
  """pred, target: (B, 1, H, W) arrays (NCHW, any float dtype). Scalar f32."""
  assert pred.shape == target.shape and pred.shape[1] == 1
  B, _, H, W = pred.shape
  itemsize = pred.dtype.itemsize

  tb = _pick_images_per_block(B, H, W, itemsize)
  nblk = B // tb
  rows = tb * H

  # Free row-major view: (B, 1, H, W) -> (B*H, W); lane axis stays W.
  pred2 = pred.reshape(B * H, W)
  targ2 = target.reshape(B * H, W)

  kernel = functools.partial(_grad_log_loss_kernel, img_h=H, alpha=float(alpha))

  # Size scoped VMEM to the real working set (v5e default is only 16 MiB);
  # leave headroom and never ask below the usual 32 MiB default.
  need = 4 * rows * W * itemsize + 10 * rows * W * 4 + (1 << 20)
  vmem_limit = int(min(max(need, 32 << 20), 100 << 20))

  cost = pl.CostEstimate(
      flops=int(32 * B * H * W),
      transcendentals=int(B * H * W),
      bytes_accessed=int(2 * B * H * W * itemsize + nblk * W * 4),
  )

  partials = pl.pallas_call(
      kernel,
      out_shape=jax.ShapeDtypeStruct((nblk, 1, W), jnp.float32),
      grid=(nblk,),
      in_specs=[
          pl.BlockSpec((rows, W), lambda b: (b, 0)),
          pl.BlockSpec((rows, W), lambda b: (b, 0)),
      ],
      out_specs=pl.BlockSpec((1, 1, W), lambda b: (b, 0, 0)),
      compiler_params=pltpu.CompilerParams(
          dimension_semantics=("parallel",),
          vmem_limit_bytes=vmem_limit),
      cost_estimate=cost,
  )(pred2, targ2)

  # Tiny final reduce (cross-lane + cross-block) and the mean normalization.
  return jnp.sum(partials) / (B * H * W)


def _reference(pred, target, alpha=ALPHA):
  """Pure-JAX reference (lax conv) for a correctness check."""
  kx = jnp.array(_SOBEL_KX, jnp.float32).reshape(1, 1, 3, 3)
  ky = jnp.array(_SOBEL_KY, jnp.float32).reshape(1, 1, 3, 3)
  w = jnp.concatenate([kx, ky], axis=0)  # (2,1,3,3) OIHW

  def sob(x):
    o = jax.lax.conv_general_dilated(
        x.astype(jnp.float32), w, (1, 1), ((1, 1), (1, 1)),
        dimension_numbers=("NCHW", "OIHW", "NCHW"))
    return o[:, 0], o[:, 1]

  t_dx, t_dy = sob(target)
  p_dx, p_dy = sob(pred)
  l_dx = jnp.mean(jnp.log(jnp.abs(p_dx - t_dx) + alpha))
  l_dy = jnp.mean(jnp.log(jnp.abs(p_dy - t_dy) + alpha))
  return l_dx + l_dy


if __name__ == "__main__":
  key = jax.random.PRNGKey(0)
  k1, k2 = jax.random.split(key)
  # B=8 so the test exercises multi-image blocks (TB=2) AND a multi-step
  # "parallel" grid (4 steps), including the modular per-image row masks.
  B, C, H, W = 8, 1, 16, 16
  pred = jax.random.uniform(k1, (B, C, H, W), jnp.float32)
  target = jax.random.uniform(k2, (B, C, H, W), jnp.float32)

  loss = jax.block_until_ready(grad_log_loss(pred, target))
  ref = jax.block_until_ready(_reference(pred, target))

  if not jnp.allclose(loss, ref, rtol=1e-5, atol=1e-5):
    raise AssertionError(f"mismatch: pallas={loss} ref={ref}")
  print("KERNEL_OK")
</pallas_src>

<mosaic_0001>
module attributes {stable_mosaic.version = 11 : i64} {
  func.func @_grad_log_loss_kernel(%arg0: i32, %arg1: memref<32x16xf32, #tpu.memory_space<vmem>>, %arg2: memref<32x16xf32, #tpu.memory_space<vmem>>, %arg3: memref<1x1x16xf32, #tpu.memory_space<vmem>>) attributes {dimension_semantics = [#tpu.dimension_semantics<parallel>], iteration_bounds = array<i64: 4>, scalar_prefetch = 0 : i64, scratch_operands = 0 : i64, tpu.core_type = #tpu.core_type<tc>, window_params = [{transform_indices = @transform_0, window_bounds = array<i64: 32, 16>}, {transform_indices = @transform_1, window_bounds = array<i64: 32, 16>}, {transform_indices = @transform_2, window_bounds = array<i64: 1, 1, 16>}]} {
    %c0 = arith.constant 0 : index
    %c0_0 = arith.constant 0 : index
    %0 = vector.load %arg1[%c0, %c0_0] : memref<32x16xf32, #tpu.memory_space<vmem>>, vector<32x16xf32>
    %c0_1 = arith.constant 0 : index
    %c0_2 = arith.constant 0 : index
    %1 = vector.load %arg2[%c0_1, %c0_2] : memref<32x16xf32, #tpu.memory_space<vmem>>, vector<32x16xf32>
    %2 = arith.subf %0, %1 : vector<32x16xf32>
    %3 = tpu.iota {dimensions = array<i32: 1>} : vector<32x16xi32>
    %4 = tpu.iota {dimensions = array<i32: 0>} : vector<32x16xi32>
    %c16_i32 = arith.constant 16 : i32
    %c0_i32 = arith.constant 0 : i32
    %5 = arith.cmpi eq, %c16_i32, %c0_i32 : i32
    %c1_i32 = arith.constant 1 : i32
    %6 = arith.select %5, %c1_i32, %c16_i32 : i32
    %7 = vector.broadcast %6 : i32 to vector<32x16xi32>
    %8 = arith.remsi %4, %7 : vector<32x16xi32>
    %c0_i32_3 = arith.constant 0 : i32
    %9 = vector.broadcast %c0_i32_3 : i32 to vector<32x16xi32>
    %10 = arith.cmpi ne, %8, %9 : vector<32x16xi32>
    %c0_i32_4 = arith.constant 0 : i32
    %11 = vector.broadcast %c0_i32_4 : i32 to vector<32x16xi32>
    %12 = arith.cmpi slt, %8, %11 : vector<32x16xi32>
    %c0_i32_5 = arith.constant 0 : i32
    %13 = arith.cmpi slt, %6, %c0_i32_5 : i32
    %14 = vector.broadcast %13 : i1 to vector<32x16xi1>
    %15 = vector.broadcast %14 : vector<32x16xi1> to vector<32x16xi1>
    %16 = arith.xori %12, %15 : vector<32x16xi1>
    %17 = arith.andi %16, %10 : vector<32x16xi1>
    %18 = vector.broadcast %6 : i32 to vector<32x16xi32>
    %19 = arith.addi %8, %18 : vector<32x16xi32>
    %20 = arith.select %17, %19, %8 : vector<32x16xi1>, vector<32x16xi32>
    %c1_i32_6 = arith.constant 1 : i32
    %21 = vector.broadcast %c1_i32_6 : i32 to vector<32x16xi32>
    %22 = arith.cmpi sge, %3, %21 : vector<32x16xi32>
    %c15_i32 = arith.constant 15 : i32
    %23 = vector.broadcast %c15_i32 : i32 to vector<32x16xi32>
    %24 = arith.cmpi slt, %3, %23 : vector<32x16xi32>
    %c1_i32_7 = arith.constant 1 : i32
    %25 = vector.broadcast %c1_i32_7 : i32 to vector<32x16xi32>
    %26 = arith.cmpi sge, %20, %25 : vector<32x16xi32>
    %c15_i32_8 = arith.constant 15 : i32
    %27 = vector.broadcast %c15_i32_8 : i32 to vector<32x16xi32>
    %28 = arith.cmpi slt, %20, %27 : vector<32x16xi32>
    %c1_i32_9 = arith.constant 1 : i32
    %29 = tpu.dynamic_rotate %2 by %c1_i32_9 dim 1 : vector<32x16xf32>, i32 -> vector<32x16xf32>
    %cst = arith.constant 0.000000e+00 : f32
    %30 = vector.broadcast %cst : f32 to vector<32x16xf32>
    %31 = arith.select %22, %29, %30 : vector<32x16xi1>, vector<32x16xf32>
    %c15_i32_10 = arith.constant 15 : i32
    %32 = tpu.dynamic_rotate %2 by %c15_i32_10 dim 1 : vector<32x16xf32>, i32 -> vector<32x16xf32>
    %cst_11 = arith.constant 0.000000e+00 : f32
    %33 = vector.broadcast %cst_11 : f32 to vector<32x16xf32>
    %34 = arith.select %24, %32, %33 : vector<32x16xi1>, vector<32x16xf32>
    %35 = arith.subf %31, %34 : vector<32x16xf32>
    %cst_12 = arith.constant 2.000000e+00 : f32
    %36 = vector.broadcast %cst_12 : f32 to vector<32x16xf32>
    %37 = arith.mulf %36, %2 : vector<32x16xf32>
    %38 = arith.addf %31, %37 : vector<32x16xf32>
    %39 = arith.addf %38, %34 : vector<32x16xf32>
    %c1_i32_13 = arith.constant 1 : i32
    %40 = tpu.dynamic_rotate %35 by %c1_i32_13 dim 0 : vector<32x16xf32>, i32 -> vector<32x16xf32>
    %cst_14 = arith.constant 0.000000e+00 : f32
    %41 = vector.broadcast %cst_14 : f32 to vector<32x16xf32>
    %42 = arith.select %26, %40, %41 : vector<32x16xi1>, vector<32x16xf32>
    %cst_15 = arith.constant 2.000000e+00 : f32
    %43 = vector.broadcast %cst_15 : f32 to vector<32x16xf32>
    %44 = arith.mulf %43, %35 : vector<32x16xf32>
    %45 = arith.addf %42, %44 : vector<32x16xf32>
    %c31_i32 = arith.constant 31 : i32
    %46 = tpu.dynamic_rotate %35 by %c31_i32 dim 0 : vector<32x16xf32>, i32 -> vector<32x16xf32>
    %cst_16 = arith.constant 0.000000e+00 : f32
    %47 = vector.broadcast %cst_16 : f32 to vector<32x16xf32>
    %48 = arith.select %28, %46, %47 : vector<32x16xi1>, vector<32x16xf32>
    %49 = arith.addf %45, %48 : vector<32x16xf32>
    %c1_i32_17 = arith.constant 1 : i32
    %50 = tpu.dynamic_rotate %39 by %c1_i32_17 dim 0 : vector<32x16xf32>, i32 -> vector<32x16xf32>
    %cst_18 = arith.constant 0.000000e+00 : f32
    %51 = vector.broadcast %cst_18 : f32 to vector<32x16xf32>
    %52 = arith.select %26, %50, %51 : vector<32x16xi1>, vector<32x16xf32>
    %c31_i32_19 = arith.constant 31 : i32
    %53 = tpu.dynamic_rotate %39 by %c31_i32_19 dim 0 : vector<32x16xf32>, i32 -> vector<32x16xf32>
    %cst_20 = arith.constant 0.000000e+00 : f32
    %54 = vector.broadcast %cst_20 : f32 to vector<32x16xf32>
    %55 = arith.select %28, %53, %54 : vector<32x16xi1>, vector<32x16xf32>
    %56 = arith.subf %52, %55 : vector<32x16xf32>
    %57 = math.absf %49 : vector<32x16xf32>
    %cst_21 = arith.constant 5.000000e-01 : f32
    %58 = vector.broadcast %cst_21 : f32 to vector<32x16xf32>
    %59 = arith.addf %57, %58 : vector<32x16xf32>
    %60 = math.absf %56 : vector<32x16xf32>
    %cst_22 = arith.constant 5.000000e-01 : f32
    %61 = vector.broadcast %cst_22 : f32 to vector<32x16xf32>
    %62 = arith.addf %60, %61 : vector<32x16xf32>
    %63 = arith.mulf %59, %62 : vector<32x16xf32>
    %64 = math.log %63 : vector<32x16xf32>
    %cst_23 = arith.constant dense<0.000000e+00> : vector<16xf32>
    %65 = vector.multi_reduction <add>, %64, %cst_23 [0] : vector<32x16xf32> to vector<16xf32>
    %66 = vector.shape_cast %65 : vector<16xf32> to vector<1x1x16xf32>
    %c0_24 = arith.constant 0 : index
    %c0_25 = arith.constant 0 : index
    %c0_26 = arith.constant 0 : index
    %67 = vector.load %arg3[%c0_24, %c0_25, %c0_26] : memref<1x1x16xf32, #tpu.memory_space<vmem>>, vector<1x1x16xf32>
    tpu.vector_store %arg3[%c0_24, %c0_25, %c0_26], %66 {strides = array<i32>} : memref<1x1x16xf32, #tpu.memory_space<vmem>>, vector<1x1x16xf32>,
    return
  }
  func.func @transform_0(%arg0: i32) -> (i32, i32) {
    %c0_i32 = arith.constant 0 : i32
    %c0_i32_0 = arith.constant 0 : i32
    return %arg0, %c0_i32 : i32, i32
  }
  func.func @transform_1(%arg0: i32) -> (i32, i32) {
    %c0_i32 = arith.constant 0 : i32
    %c0_i32_0 = arith.constant 0 : i32
    return %arg0, %c0_i32 : i32, i32
  }
  func.func @transform_2(%arg0: i32) -> (i32, i32, i32) {
    %c0_i32 = arith.constant 0 : i32
    %c0_i32_0 = arith.constant 0 : i32
    %c0_i32_1 = arith.constant 0 : i32
    return %arg0, %c0_i32, %c0_i32_0 : i32, i32, i32
  }
}

</mosaic_0001>

<llo_original>
// kernel: tpu_custom_call.1
$region0: #{tpu_custom_call.1}
  #allocation0 [shape = 'u32[]', space=smem, size = 0x4, offset = 0x4, fixed_abs, tag = 'smem constant byte address 0x4 - core index']
  #allocation1 [shape = 'u32[144,128]{1,0:T(1,128)}', space=vmem, size = 0x12000, scoped, tag = 'internal scratch']
  %s0 = inlined_call_operand.vmem [shape: f32[128,16], index: 0, kind: input, shape index: {}]
  %s1 = inlined_call_operand.vmem [shape: f32[128,16], index: 1, kind: input, shape index: {}]
  %s2 = inlined_call_operand.hbm [shape: f32[4,1,16], index: 2, kind: output, shape index: {}]
  %s3 = sld [smem:[#allocation0]]
  $region41: #{tpu_custom_call.1} parent=0
    _
  %s5 = ssub.s32 1, %s3
  %s6 = scalar_select 0, %s5, %s3
  $region1: #{tpu_custom_call.1} parent=0
    #allocation2 [shape = 'u8[1024]{0}', space=vmem, size = 0x400, scoped, tag = 'output window, operand 0']
    #allocation3 [shape = 's32[2]{0}', space=sflag, size = 0x8, scoped, tag = 'scoped memory for tpu_custom_call.1']
    %7 = vsyncpa [#allocation3], 0
    %s8 = scalar_lea.sflag [#allocation3], 1
    %9 = vsyncpa %s8, 0
    loop: start=0, step=1, limit=6
    $region2: #{tpu_custom_call.1} parent=1 // loop_pre_header
      _
    $region3: #{tpu_custom_call.1} parent=1 // loop_header
      %s11 = sphi 0, %s15
      %p12 = scmp.ge.s32.totalorder %s11, 6
      %s21 = sphi 0, %s23
      %s24 = sphi 0, %s21
      %s25 = sphi 0, %s24
      %s41 = sphi 0, %s25
      %s47 = sphi 0, %s49
      %s50 = sphi 0, %s47
      %s51 = sphi 0, %s50
      %s67 = sphi 0, %s51
      %s73 = sphi 0, %s75
      %s76 = sphi 0, %s73
      %s77 = sphi 0, %s76
      %s93 = sphi 0, %s77
    $region4: #{tpu_custom_call.1} parent=1 // loop_header_branch
      %14 = sbr.rel (%p12) target = $region8
    $region5: #{tpu_custom_call.1} parent=1 // loop_body
      %s16 = ssub.s32 %s11, 1
      %s17 = ssub.s32 %s11, 2
      %s18 = sadd.s32 %s11, 1
      %s19 = ssub.s32 %s11, %s18
      %p20 = scmp.eq.s32.totalorder %s19, 0
      %s22 = sadd.s32 %s21, 1
      %s23 = scalar_select %p20, %s21, %s22
      %p26 = pneg %p20
      %p27 = scmp.eq.s32.totalorder %s11, 3
      %p28 = por %p26, %p27
      %p29 = scmp.ne.s32.totalorder %s21, %s24
      %p30 = scmp.eq.s32.totalorder %s11, 0
      %p31 = por %p29, %p30
      %p32 = scmp.ne.s32.totalorder %s21, %s24
      %p33 = scmp.eq.s32.totalorder %s16, 3
      %p34 = por %p32, %p33
      %p35 = scmp.ne.s32.totalorder %s24, %s25
      %p36 = scmp.eq.s32.totalorder %s16, 0
      %p37 = por %p35, %p36
      %p38 = scmp.ne.s32.totalorder %s24, %s25
      %p39 = scmp.eq.s32.totalorder %s17, 3
      %p40 = por %p38, %p39
      %p42 = scmp.ne.s32.totalorder %s25, %s41
      %p43 = scmp.eq.s32.totalorder %s17, 0
      %p44 = por %p42, %p43
      %s45 = ssub.s32 %s11, %s18
      %p46 = scmp.eq.s32.totalorder %s45, 0
      %s48 = sadd.s32 %s47, 1
      %s49 = scalar_select %p46, %s47, %s48
      %p52 = pneg %p46
      %p53 = scmp.eq.s32.totalorder %s11, 3
      %p54 = por %p52, %p53
      %p55 = scmp.ne.s32.totalorder %s47, %s50
      %p56 = scmp.eq.s32.totalorder %s11, 0
      %p57 = por %p55, %p56
      %p58 = scmp.ne.s32.totalorder %s47, %s50
      %p59 = scmp.eq.s32.totalorder %s16, 3
      %p60 = por %p58, %p59
      %p61 = scmp.ne.s32.totalorder %s50, %s51
      %p62 = scmp.eq.s32.totalorder %s16, 0
      %p63 = por %p61, %p62
      %p64 = scmp.ne.s32.totalorder %s50, %s51
      %p65 = scmp.eq.s32.totalorder %s17, 3
      %p66 = por %p64, %p65
      %p68 = scmp.ne.s32.totalorder %s51, %s67
      %p69 = scmp.eq.s32.totalorder %s17, 0
      %p70 = por %p68, %p69
      %s71 = ssub.s32 %s11, %s18
      %p72 = scmp.eq.s32.totalorder %s71, 0
      %s74 = sadd.s32 %s73, 1
      %s75 = scalar_select %p72, %s73, %s74
      %p78 = pneg %p72
      %p79 = scmp.eq.s32.totalorder %s11, 3
      %p80 = por %p78, %p79
      %p81 = scmp.ne.s32.totalorder %s73, %s76
      %p82 = scmp.eq.s32.totalorder %s11, 0
      %p83 = por %p81, %p82
      %p84 = scmp.ne.s32.totalorder %s73, %s76
      %p85 = scmp.eq.s32.totalorder %s16, 3
      %p86 = por %p84, %p85
      %p87 = scmp.ne.s32.totalorder %s76, %s77
      %p88 = scmp.eq.s32.totalorder %s16, 0
      %p89 = por %p87, %p88
      %p90 = scmp.ne.s32.totalorder %s76, %s77
      %p91 = scmp.eq.s32.totalorder %s17, 3
      %p92 = por %p90, %p91
      %p94 = scmp.ne.s32.totalorder %s77, %s93
      %p95 = scmp.eq.s32.totalorder %s17, 0
      %p96 = por %p94, %p95
      %p97 = scmp.le.s32.totalorder 1, %s11
      %p98 = scmp.lt.s32.totalorder %s11, 5
      %p99 = pnand %p97, %p98
      %p100 = pneg %p99
      // Predicated region
      $region9: #{tpu_custom_call.1} parent=5 // pred_check
        _
      $region10: #{tpu_custom_call.1} parent=5 // pred_check_branch
        %102 = sbr.rel (%p99) target = $region12
      $region11: #{tpu_custom_call.1} parent=5 // pred_region
        %s103 = ssub.s32 %s11, 1
      $region12: #{tpu_custom_call.1} parent=5 // pred_fallthru
        _
      %p104 = scmp.lt.s32.totalorder %s11, 4
      // Predicated region
      $region13: #{tpu_custom_call.1} parent=5 // pred_check
        %p105 = pneg %p104
      $region14: #{tpu_custom_call.1} parent=5 // pred_check_branch
        %107 = sbr.rel (%p105) target = $region16
      $region15: #{tpu_custom_call.1} parent=5 // pred_region
        // Predicated region
        $region17: #{tpu_custom_call.1} parent=15 // pred_check
          %p108 = pneg %p31
        $region18: #{tpu_custom_call.1} parent=15 // pred_check_branch
          %110 = sbr.rel (%p108) target = $region20
        $region19: #{tpu_custom_call.1} parent=15 // pred_region
          %s111 = smul.u32 4, %s11
          %p112 = scmp.lt.s32.totalorder %s111, 15
          %s113 = scalar_select %p112, %s111, 15
          %s114 = smul.addr %s113, 8
          %s115 = scalar_lea.vmem %s0, %s114
          %s116 = smul.u32 4, %s11
        $region20: #{tpu_custom_call.1} parent=15 // pred_fallthru
          _
        // Predicated region
        $region21: #{tpu_custom_call.1} parent=15 // pred_check
          %p117 = pneg %p57
        $region22: #{tpu_custom_call.1} parent=15 // pred_check_branch
          %119 = sbr.rel (%p117) target = $region24
        $region23: #{tpu_custom_call.1} parent=15 // pred_region
          %s120 = smul.u32 4, %s11
          %p121 = scmp.lt.s32.totalorder %s120, 15
          %s122 = scalar_select %p121, %s120, 15
          %s123 = smul.addr %s122, 8
          %s124 = scalar_lea.vmem %s1, %s123
          %s125 = smul.u32 4, %s11
        $region24: #{tpu_custom_call.1} parent=15 // pred_fallthru
          _
      $region16: #{tpu_custom_call.1} parent=5 // pred_fallthru
        _
      %p126 = scmp.le.s32.totalorder 1, %s11
      %p127 = scmp.lt.s32.totalorder %s11, 5
      %p128 = pnand %p126, %p127
      %p129 = pneg %p128
      // Predicated region
      $region25: #{tpu_custom_call.1} parent=5 // pred_check
        _
      $region26: #{tpu_custom_call.1} parent=5 // pred_check_branch
        %131 = sbr.rel (%p128) target = $region28
      $region27: #{tpu_custom_call.1} parent=5 // pred_region
        %s132 = ssub.s32 %s11, 1
        %s133 = smul.u32 4, %s16
        %p134 = scmp.lt.s32.totalorder %s133, 15
        %s135 = scalar_select %p134, %s133, 15
        %s136 = smul.addr %s135, 8
        %s137 = scalar_lea.vmem %s0, %s136
        %p138 = pneg %p37
        %p139 = pneg %p34
        %s140 = smul.u32 4, %s16
        %p141 = scmp.lt.s32.totalorder %s140, 15
        %s142 = scalar_select %p141, %s140, 15
        %s143 = smul.addr %s142, 8
        %s144 = scalar_lea.vmem %s1, %s143
        %p145 = pneg %p63
        %p146 = pneg %p60
        %p147 = pneg %p89
        %p148 = pneg %p86
        %s149 = sand.u32 %s76, 1
        %s150 = scalar_lea.sflag [#allocation3], %s149
        %s151 = sand.u32 %s76, 1
        %s152 = scalar_lea.vmem [#allocation2], %s151
        %s153 = smul.u32 4, %s16
        %p154 = scmp.lt.s32.totalorder %s153, 15
        %s155 = scalar_select %p154, %s153, 15
        %s156 = smul.addr %s155, 8
        %s157 = scalar_lea.vmem %s0, %s156
        %s158 = smul.u32 4, %s16
        %s159 = smul.u32 4, %s16
        %p160 = scmp.lt.s32.totalorder %s159, 15
        %s161 = scalar_select %p160, %s159, 15
        %s162 = smul.addr %s161, 8
        %s163 = scalar_lea.vmem %s1, %s162
        %s164 = smul.u32 4, %s16
        %v165 = vld [vmem:[%s157] sm:$0xff]
        %v166 = vld [vmem:[%s157 + $0x8] sm:$0xff]
        %v167 = vld [vmem:[%s157 + $0x10] sm:$0xff]
        %v168 = vld [vmem:[%s157 + $0x18] sm:$0xff]
        %v169 = vld [vmem:[%s163] sm:$0xff]
        %v170 = vld [vmem:[%s163 + $0x8] sm:$0xff]
        %v171 = vld [vmem:[%s163 + $0x10] sm:$0xff]
        %v172 = vld [vmem:[%s163 + $0x18] sm:$0xff]
        %v173 = vsub.f32 %v165, %v169
        %v174 = vsub.f32 %v166, %v170
        %v175 = vsub.f32 %v167, %v171
        %v176 = vsub.f32 %v168, %v172
        %v177 = vlaneseq
        %v178 = vand.u32 %v177, 127
        %v179 = vlaneseq
        %v180 = vshrl.u32 %v179, 7
        %v181 = vadd.s32 %v180, 8
        %v182 = vadd.s32 %v180, 16
        %v183 = vadd.s32 %v180, 24
        %vm184 = vcmp.lt.s32.totalorder %v180, 0
        %v185 = vsub.s32 0, %v180
        %v186 = vsel %vm184, %v185, %v180
        %v187 = vshrl.u32 %v186, 4
        %v188 = vand.u32 %v186, 15
        %v189 = vsub.s32 0, %v188
        %v190 = vsel %vm184, %v189, %v188
        %vm191 = vcmp.lt.s32.totalorder %v181, 0
        %v192 = vsub.s32 0, %v181
        %v193 = vsel %vm191, %v192, %v181
        %v194 = vshrl.u32 %v193, 4
        %v195 = vand.u32 %v193, 15
        %v196 = vsub.s32 0, %v195
        %v197 = vsel %vm191, %v196, %v195
        %vm198 = vcmp.lt.s32.totalorder %v182, 0
        %v199 = vsub.s32 0, %v182
        %v200 = vsel %vm198, %v199, %v182
        %v201 = vshrl.u32 %v200, 4
        %v202 = vand.u32 %v200, 15
        %v203 = vsub.s32 0, %v202
        %v204 = vsel %vm198, %v203, %v202
        %vm205 = vcmp.lt.s32.totalorder %v183, 0
        %v206 = vsub.s32 0, %v183
        %v207 = vsel %vm205, %v206, %v183
        %v208 = vshrl.u32 %v207, 4
        %v209 = vand.u32 %v207, 15
        %v210 = vsub.s32 0, %v209
        %v211 = vsel %vm205, %v210, %v209
        %vm212 = vcmp.ne.s32.totalorder %v190, 0
        %vm213 = vcmp.ne.s32.totalorder %v197, 0
        %vm214 = vcmp.ne.s32.totalorder %v204, 0
        %vm215 = vcmp.ne.s32.totalorder %v211, 0
        %vm216 = vcmp.lt.s32.totalorder %v190, 0
        %vm217 = vcmp.lt.s32.totalorder %v197, 0
        %vm218 = vcmp.lt.s32.totalorder %v204, 0
        %vm219 = vcmp.lt.s32.totalorder %v211, 0
        %vm220 = vmand %vm216, %vm212
        %vm221 = vmand %vm217, %vm213
        %vm222 = vmand %vm218, %vm214
        %vm223 = vmand %vm219, %vm215
        %v224 = vadd.s32 %v190, 16
        %v225 = vadd.s32 %v197, 16
        %v226 = vadd.s32 %v204, 16
        %v227 = vadd.s32 %v211, 16
        %v228 = vsel %vm220, %v224, %v190
        %v229 = vsel %vm221, %v225, %v197
        %v230 = vsel %vm222, %v226, %v204
        %v231 = vsel %vm223, %v227, %v211
        %vm232 = vcmp.ge.s32.totalorder %v178, 1
        %vm233 = vcmp.lt.s32.totalorder %v178, 15
        %vm234 = vcmp.ge.s32.totalorder %v228, 1
        %vm235 = vcmp.ge.s32.totalorder %v229, 1
        %vm236 = vcmp.ge.s32.totalorder %v230, 1
        %vm237 = vcmp.ge.s32.totalorder %v231, 1
        %vm238 = vcmp.lt.s32.totalorder %v228, 15
        %vm239 = vcmp.lt.s32.totalorder %v229, 15
        %vm240 = vcmp.lt.s32.totalorder %v230, 15
        %vm241 = vcmp.lt.s32.totalorder %v231, 15
        %vm242 = vcmask 1047680
        %243 = vrot.lane.b32.xlu0 %v173, 16
        %v244 = vpop.permute.xlu0 %243
        %v245 = vsel %vm242, %v244, %v173
        %246 = vrot.lane.b32.xlu0 %v174, 16
        %v247 = vpop.permute.xlu0 %246
        %v248 = vsel %vm242, %v247, %v174
        %249 = vrot.lane.b32.xlu0 %v175, 16
        %v250 = vpop.permute.xlu0 %249
        %v251 = vsel %vm242, %v250, %v175
        %252 = vrot.lane.b32.xlu0 %v176, 16
        %v253 = vpop.permute.xlu0 %252
        %v254 = vsel %vm242, %v253, %v176
        %255 = vrot.lane.b32.xlu0 %v245, 16
        %v256 = vpop.permute.xlu0 %255
        %257 = vrot.lane.b32.xlu0 %v248, 16
        %v258 = vpop.permute.xlu0 %257
        %259 = vrot.lane.b32.xlu0 %v251, 16
        %v260 = vpop.permute.xlu0 %259
        %261 = vrot.lane.b32.xlu0 %v254, 16
        %v262 = vpop.permute.xlu0 %261
        %v263 = vsel %vm242, %v256, %v173
        %v264 = vsel %vm242, %v258, %v174
        %v265 = vsel %vm242, %v260, %v175
        %v266 = vsel %vm242, %v262, %v176
        %271 = vrot.lane.b32.xlu0 %v263, 113
        %v272 = vpop.permute.xlu0 %271
        %273 = vrot.lane.b32.xlu0 %v264, 113
        %v274 = vpop.permute.xlu0 %273
        %275 = vrot.lane.b32.xlu0 %v265, 113
        %v276 = vpop.permute.xlu0 %275
        %277 = vrot.lane.b32.xlu0 %v266, 113
        %v278 = vpop.permute.xlu0 %277
        %v283 = vsel %vm232, %v272, 0.0
        %v284 = vsel %vm232, %v274, 0.0
        %v285 = vsel %vm232, %v276, 0.0
        %v286 = vsel %vm232, %v278, 0.0
        %287 = vrot.lane.b32.xlu0 %v263, 127
        %v288 = vpop.permute.xlu0 %287
        %289 = vrot.lane.b32.xlu0 %v264, 127
        %v290 = vpop.permute.xlu0 %289
        %291 = vrot.lane.b32.xlu0 %v265, 127
        %v292 = vpop.permute.xlu0 %291
        %293 = vrot.lane.b32.xlu0 %v266, 127
        %v294 = vpop.permute.xlu0 %293
        %v299 = vsel %vm233, %v288, 0.0
        %v300 = vsel %vm233, %v290, 0.0
        %v301 = vsel %vm233, %v292, 0.0
        %v302 = vsel %vm233, %v294, 0.0
        %v303 = vsub.f32 %v283, %v299
        %v304 = vsub.f32 %v284, %v300
        %v305 = vsub.f32 %v285, %v301
        %v306 = vsub.f32 %v286, %v302
        %v307 = vmul.f32 %v173, 2.0
        %v308 = vmul.f32 %v174, 2.0
        %v309 = vmul.f32 %v175, 2.0
        %v310 = vmul.f32 %v176, 2.0
        %v311 = vadd.f32 %v283, %v307
        %v312 = vadd.f32 %v284, %v308
        %v313 = vadd.f32 %v285, %v309
        %v314 = vadd.f32 %v286, %v310
        %v315 = vadd.f32 %v311, %v299
        %v316 = vadd.f32 %v312, %v300
        %v317 = vadd.f32 %v313, %v301
        %v318 = vadd.f32 %v314, %v302
        %v319 = vrot.slane %v303, 7
        %v320 = vrot.slane %v304, 7
        %v321 = vrot.slane %v305, 7
        %v322 = vrot.slane %v306, 7
        %vm323 = vcmp.lt.s32.totalorder %v180, 1
        %v324 = vsel %vm323, %v321, %v322
        %v325 = vsel %vm323, %v320, %v321
        %v326 = vsel %vm323, %v319, %v320
        %v327 = vsel %vm323, %v322, %v319
        %v328 = vsel %vm234, %v327, 0.0
        %v329 = vsel %vm235, %v326, 0.0
        %v330 = vsel %vm236, %v325, 0.0
        %v331 = vsel %vm237, %v324, 0.0
        %v332 = vmul.f32 %v303, 2.0
        %v333 = vmul.f32 %v304, 2.0
        %v334 = vmul.f32 %v305, 2.0
        %v335 = vmul.f32 %v306, 2.0
        %v336 = vadd.f32 %v328, %v332
        %v337 = vadd.f32 %v329, %v333
        %v338 = vadd.f32 %v330, %v334
        %v339 = vadd.f32 %v331, %v335
        %v340 = vrot.slane %v303, 1
        %v341 = vrot.slane %v304, 1
        %v342 = vrot.slane %v305, 1
        %v343 = vrot.slane %v306, 1
        %vm344 = vcmp.lt.s32.totalorder %v180, 7
        %v345 = vsel %vm344, %v342, %v343
        %v346 = vsel %vm344, %v341, %v342
        %v347 = vsel %vm344, %v340, %v341
        %v348 = vsel %vm344, %v343, %v340
        %v349 = vsel %vm238, %v347, 0.0
        %v350 = vsel %vm239, %v346, 0.0
        %v351 = vsel %vm240, %v345, 0.0
        %v352 = vsel %vm241, %v348, 0.0
        %v353 = vadd.f32 %v336, %v349
        %v354 = vadd.f32 %v337, %v350
        %v355 = vadd.f32 %v338, %v351
        %v356 = vadd.f32 %v339, %v352
        %v357 = vrot.slane %v315, 7
        %v358 = vrot.slane %v316, 7
        %v359 = vrot.slane %v317, 7
        %v360 = vrot.slane %v318, 7
        %v361 = vsel %vm323, %v359, %v360
        %v362 = vsel %vm323, %v358, %v359
        %v363 = vsel %vm323, %v357, %v358
        %v364 = vsel %vm323, %v360, %v357
        %v365 = vsel %vm234, %v364, 0.0
        %v366 = vsel %vm235, %v363, 0.0
        %v367 = vsel %vm236, %v362, 0.0
        %v368 = vsel %vm237, %v361, 0.0
        %v369 = vrot.slane %v315, 1
        %v370 = vrot.slane %v316, 1
        %v371 = vrot.slane %v317, 1
        %v372 = vrot.slane %v318, 1
        %v373 = vsel %vm344, %v371, %v372
        %v374 = vsel %vm344, %v370, %v371
        %v375 = vsel %vm344, %v369, %v370
        %v376 = vsel %vm344, %v372, %v369
        %v377 = vsel %vm238, %v375, 0.0
        %v378 = vsel %vm239, %v374, 0.0
        %v379 = vsel %vm240, %v373, 0.0
        %v380 = vsel %vm241, %v376, 0.0
        %v381 = vsub.f32 %v365, %v377
        %v382 = vsub.f32 %v366, %v378
        %v383 = vsub.f32 %v367, %v379
        %v384 = vsub.f32 %v368, %v380
        %v385 = vand.u32 2147483647, %v353
        %v386 = vand.u32 2147483647, %v354
        %v387 = vand.u32 2147483647, %v355
        %v388 = vand.u32 2147483647, %v356
        %v389 = vadd.f32 %v385, 0.5
        %v390 = vadd.f32 %v386, 0.5
        %v391 = vadd.f32 %v387, 0.5
        %v392 = vadd.f32 %v388, 0.5
        %v393 = vand.u32 2147483647, %v381
        %v394 = vand.u32 2147483647, %v382
        %v395 = vand.u32 2147483647, %v383
        %v396 = vand.u32 2147483647, %v384
        %v397 = vadd.f32 %v393, 0.5
        %v398 = vadd.f32 %v394, 0.5
        %v399 = vadd.f32 %v395, 0.5
        %v400 = vadd.f32 %v396, 0.5
        %v401 = vmul.f32 %v389, %v397
        %v402 = vmul.f32 %v390, %v398
        %v403 = vmul.f32 %v391, %v399
        %v404 = vmul.f32 %v392, %v400
        %v405 = vlog2.pop %v401
        %v406 = vmul.f32 %v405, 0.6931472
        %v407 = vlog2.pop %v402
        %v408 = vmul.f32 %v407, 0.6931472
        %v409 = vlog2.pop %v403
        %v410 = vmul.f32 %v409, 0.6931472
        %v411 = vlog2.pop %v404
        %v412 = vmul.f32 %v411, 0.6931472
        %vm413 = vcmask 130048
        %v414 = vsel %vm413, %v406, 0.0
        %v415 = vsel %vm413, %v408, 0.0
        %v416 = vadd.f32 %v414, %v415
        %v417 = vsel %vm413, %v410, 0.0
        %v418 = vadd.f32 %v416, %v417
        %v419 = vsel %vm413, %v412, 0.0
        %v420 = vadd.f32 %v418, %v419
        %v421 = vrot.slane %v420, 4
        %v422 = vadd.f32 %v420, %v421
        %v423 = vrot.slane %v422, 2
        %v424 = vadd.f32 %v422, %v423
        %v425 = vrot.slane %v424, 1
        %v426 = vadd.f32 %v424, %v425
        %vm427 = vcmask 122880
        %428 = vst.msk [vmem:[%s152] sm:$0x1] %vm427, %v426
        %s429 = sand.u32 %s76, 1
        %s430 = scalar_lea.sflag [#allocation3], %s429
        %s431 = sand.u32 %s76, 1
        %s432 = scalar_lea.vmem [#allocation2], %s431
        // Predicated region
        $region29: #{tpu_custom_call.1} parent=27 // pred_check
          %p433 = pneg %p86
        $region30: #{tpu_custom_call.1} parent=27 // pred_check_branch
          %435 = sbr.rel (%p433) target = $region32
        $region31: #{tpu_custom_call.1} parent=27 // pred_region
          %s437 = ssub.s32 16, 16
          %438 = vsyncadd %s430, %s437
          %s439 = smul.addr %s16, 16
          %s440 = scalar_lea.hbm %s2, %s439
          %s442 = sshll.u32 %s432, 4
          %s443 = int_to_ptr.vmem [resolvable:$true] %s442
          %445 = dma.vmem_to_hbm [thread:$0]  %s443, 16, %s440, %s430
        $region32: #{tpu_custom_call.1} parent=27 // pred_fallthru
          _
      $region28: #{tpu_custom_call.1} parent=5 // pred_fallthru
        _
      %p446 = scmp.le.s32.totalorder 2, %s11
      // Predicated region
      $region33: #{tpu_custom_call.1} parent=5 // pred_check
        %p447 = pneg %p446
      $region34: #{tpu_custom_call.1} parent=5 // pred_check_branch
        %449 = sbr.rel (%p447) target = $region36
      $region35: #{tpu_custom_call.1} parent=5 // pred_region
        %s450 = ssub.s32 %s11, 2
        // Predicated region
        $region37: #{tpu_custom_call.1} parent=35 // pred_check
          %p451 = pneg %p92
        $region38: #{tpu_custom_call.1} parent=35 // pred_check_branch
          %453 = sbr.rel (%p451) target = $region40
        $region39: #{tpu_custom_call.1} parent=35 // pred_region
          %s454 = sand.u32 %s77, 1
          %s455 = scalar_lea.sflag [#allocation3], %s454
          %s456 = sand.u32 %s77, 1
          %s457 = scalar_lea.vmem [#allocation2], %s456
          %458 = dma.done %s455, 16
        $region40: #{tpu_custom_call.1} parent=35 // pred_fallthru
          _
      $region36: #{tpu_custom_call.1} parent=5 // pred_fallthru
        _
    $region6: #{tpu_custom_call.1} parent=1 // loop_footer
      %s15 = sadd.s32 1, %s11
    $region7: #{tpu_custom_call.1} parent=1 // loop_footer_branch
      %10 = sbr.rel target = $region3
    $region8: #{tpu_custom_call.1} parent=1 // loop_exit
      _
    %459 = vsyncpa [#allocation3], 1
    %s460 = scalar_lea.sflag [#allocation3], 1
    %461 = vsyncpa %s460, 1

</llo_original>
